<compile_context>
chip_gen: v5e
topology: v5e:2x2
jax: 0.10.0
libtpu: 0.0.40
codegen_flags: <defaults>
</compile_context>

<pallas_src>
import functools

import jax
import jax.numpy as jnp
import numpy as np
from jax.experimental import pallas as pl
from jax.experimental.pallas import tpu as pltpu


def _upblock_kernel(x_ref, s_ref, t_ref, b_ref, o_ref, *,
                    n_batch, kh_taps, h_pad, h_out, wc_out):
    """Single grid step; batch folded into the matmul M.

    x_ref: (N*H, W*C_in)               raw NHWC rows (f32), cast to bf16 in-register
    s_ref: (N*Hp, N*H)                 0/1 block-diag selection: H nearest-upsample + zero-pad
    t_ref: (W*C_in, KH*W_out*C_out)    kh-concatenated Toeplitz (W upsample + pad + kw folded in)
    b_ref: (1, W_out*C_out)            bias tiled across W_out (f32)
    o_ref: (N*H_out, W_out*C_out)      lane-dense output slab
    """
    x = x_ref[...].astype(jnp.bfloat16)
    # MXU op 1: padded/upsampled row selection (exact in bf16 -- rows are copies or zeros).
    r = jnp.dot(s_ref[...], x, preferred_element_type=jnp.float32)      # (N*Hp, W*C_in)
    r = r.astype(jnp.bfloat16)                                           # lossless (selection)
    # MXU op 2: every kh tap at once; output width KH*W_out*C_out fills the MXU on v6e/v7x.
    y = jnp.dot(r, t_ref[...], preferred_element_type=jnp.float32)      # (N*Hp, KH*WC_out)
    b = b_ref[...]                                                       # (1, WC_out) f32
    for n in range(n_batch):                 # static unroll (N=2): 128-multiple lane slices are
        base = n * h_pad                     # free; 0/1/2 sublane shifts use the idle XLU slot.
        acc = y[base:base + h_out, 0:wc_out]
        for kh in range(1, kh_taps):
            acc = acc + y[base + kh:base + kh + h_out, kh * wc_out:(kh + 1) * wc_out]
        o_ref[n * h_out:(n + 1) * h_out, :] = jnp.maximum(acc + b, 0.0).astype(o_ref.dtype)


@functools.lru_cache(maxsize=None)
def _w_toeplitz_indicator(kw_taps, w_in, w_out, padding, scale):
    """ind[kw, wi, wo] = 1 iff padded/upsampled column (wo + kw) reads original column wi."""
    ind = np.zeros((kw_taps, w_in, w_out), np.float32)
    wu = w_in * scale
    for kw in range(kw_taps):
        for wo in range(w_out):
            q = wo + kw
            if padding <= q < padding + wu:
                ind[kw, (q - padding) // scale, wo] = 1.0
    return ind


@functools.lru_cache(maxsize=None)
def _h_selection_blockdiag(n_batch, h_in, h_pad, padding, scale):
    """Block-diagonal 0/1 selection: padded/upsampled row p of batch n reads input row of batch n."""
    s = np.zeros((n_batch * h_pad, n_batch * h_in), np.float32)
    hu = h_in * scale
    for n in range(n_batch):
        for p in range(h_pad):
            if padding <= p < padding + hu:
                s[n * h_pad + p, n * h_in + (p - padding) // scale] = 1.0
    return s


def make_up_block(weight_oihw, bias, *, batch, height, width,
                  kernel_size=3, stride=1, padding=1, scale_factor=2):
    """Build a jitted NHWC forward for UpBlock; all S/T construction happens once, here."""
    assert stride == 1, "only stride=1 is supported (module config)"
    w_np = np.asarray(weight_oihw, np.float32)          # (C_out, C_in, KH, KW), PyTorch layout
    b_np = np.asarray(bias, np.float32)
    c_out, c_in, kh_taps, kw_taps = w_np.shape
    assert kh_taps == kernel_size and kw_taps == kernel_size

    N, H, W, sf = batch, height, width, scale_factor
    Hu, Wu = H * sf, W * sf
    H_out = Hu + 2 * padding - kh_taps + 1
    W_out = Wu + 2 * padding - kw_taps + 1
    Hp = Hu + 2 * padding
    WC_in, WC_out = W * c_in, W_out * c_out

    # --- one-time init-time construction (numpy; indicator matrices cached by shape) ---
    ind_w = _w_toeplitz_indicator(kw_taps, W, W_out, padding, sf)        # (KW, W, W_out)
    # t[wi, ci, kh, wo, co] = sum_kw weight[co, ci, kh, kw] * ind_w[kw, wi, wo]
    t = np.einsum('oikq,qwv->wikvo', w_np, ind_w)                        # (W, C_in, KH, W_out, C_out)
    t_cat = jnp.asarray(t.reshape(WC_in, kh_taps * WC_out), jnp.bfloat16)
    s_bd = jnp.asarray(_h_selection_blockdiag(N, H, Hp, padding, sf), jnp.bfloat16)
    b_row = jnp.asarray(np.tile(b_np, W_out).reshape(1, WC_out), jnp.float32)

    kernel = functools.partial(_upblock_kernel, n_batch=N, kh_taps=kh_taps,
                               h_pad=Hp, h_out=H_out, wc_out=WC_out)

    call = pl.pallas_call(
        kernel,
        out_shape=jax.ShapeDtypeStruct((N * H_out, WC_out), jnp.float32),
        grid=(1,),
        in_specs=[
            pl.BlockSpec((N * H, WC_in), lambda i: (0, 0)),
            pl.BlockSpec((N * Hp, N * H), lambda i: (0, 0)),
            pl.BlockSpec((WC_in, kh_taps * WC_out), lambda i: (0, 0)),
            pl.BlockSpec((1, WC_out), lambda i: (0, 0)),
        ],
        out_specs=pl.BlockSpec((N * H_out, WC_out), lambda i: (0, 0)),
        compiler_params=pltpu.CompilerParams(dimension_semantics=("arbitrary",)),
    )

    @jax.jit
    def forward(x_nhwc):
        # Free row-major reshape (NHWC end-to-end; no transpose pass).
        x_rows = x_nhwc.reshape(N * H, WC_in)
        out = call(x_rows, s_bd, t_cat, b_row)
        return out.reshape(N, H_out, W_out, c_out)

    return forward


def _reference_nhwc(x_nhwc, weight_oihw, bias, *, padding=1, scale_factor=2):
    """Pure-JAX reference matching PyTorch UpBlock semantics (on the NHWC view of the data)."""
    x_up = jnp.repeat(jnp.repeat(x_nhwc, scale_factor, axis=1), scale_factor, axis=2)
    x_pad = jnp.pad(x_up, ((0, 0), (padding, padding), (padding, padding), (0, 0)))
    w_hwio = jnp.transpose(weight_oihw, (2, 3, 1, 0))
    y = jax.lax.conv_general_dilated(
        x_pad, w_hwio, window_strides=(1, 1), padding='VALID',
        dimension_numbers=('NHWC', 'HWIO', 'NHWC'))
    y = y + bias[None, None, None, :]
    return jnp.maximum(y, 0.0)


if __name__ == "__main__":
    # Module hyperparameters (dimensions=2 variant of UpBlock).
    N, C_in, H, W = 2, 4, 16, 16
    C_out, K, PAD, SCALE = 8, 3, 1, 2

    key = jax.random.PRNGKey(0)
    kx, kwt, kb = jax.random.split(key, 3)

    # NHWC activations end-to-end (avoids the wrapper NCHW<->NHWC transpose passes).
    x = jax.random.normal(kx, (N, H, W, C_in), dtype=jnp.float32)
    # Deterministic parameter init (PyTorch-ish uniform bound 1/sqrt(fan_in)), PyTorch OIHW layout.
    bound = 1.0 / np.sqrt(C_in * K * K)
    weight = jax.random.uniform(kwt, (C_out, C_in, K, K), jnp.float32, -bound, bound)
    bias = jax.random.uniform(kb, (C_out,), jnp.float32, -bound, bound)

    forward = make_up_block(weight, bias, batch=N, height=H, width=W,
                            kernel_size=K, stride=1, padding=PAD, scale_factor=SCALE)
    out = jax.block_until_ready(forward(x))

    ref = jax.block_until_ready(_reference_nhwc(x, weight, bias, padding=PAD,
                                                scale_factor=SCALE))
    assert out.shape == (N, H * SCALE, W * SCALE, C_out), out.shape
    # bf16 MXU operands with f32 accumulation -> loosened tolerance vs. the f32 reference.
    np.testing.assert_allclose(np.asarray(out), np.asarray(ref), rtol=3e-2, atol=5e-2)

    print("KERNEL_OK")
</pallas_src>

<mosaic_0001>
module attributes {stable_mosaic.version = 11 : i64} {
  func.func @_upblock_kernel(%arg0: i32, %arg1: memref<32x64xf32, #tpu.memory_space<vmem>>, %arg2: memref<68x32xbf16, #tpu.memory_space<vmem>>, %arg3: memref<64x768xbf16, #tpu.memory_space<vmem>>, %arg4: memref<1x256xf32, #tpu.memory_space<vmem>>, %arg5: memref<64x256xf32, #tpu.memory_space<vmem>>) attributes {dimension_semantics = [#tpu.dimension_semantics<arbitrary>], iteration_bounds = array<i64: 1>, scalar_prefetch = 0 : i64, scratch_operands = 0 : i64, tpu.core_type = #tpu.core_type<tc>, window_params = [{pipeline_mode = #tpu.pipeline_mode<synchronous>, transform_indices = @transform_0, window_bounds = array<i64: 32, 64>}, {pipeline_mode = #tpu.pipeline_mode<synchronous>, transform_indices = @transform_1, window_bounds = array<i64: 68, 32>}, {pipeline_mode = #tpu.pipeline_mode<synchronous>, transform_indices = @transform_2, window_bounds = array<i64: 64, 768>}, {pipeline_mode = #tpu.pipeline_mode<synchronous>, transform_indices = @transform_3, window_bounds = array<i64: 1, 256>}, {pipeline_mode = #tpu.pipeline_mode<synchronous>, transform_indices = @transform_4, window_bounds = array<i64: 64, 256>}]} {
    %c0 = arith.constant 0 : index
    %c0_0 = arith.constant 0 : index
    %0 = vector.load %arg1[%c0, %c0_0] : memref<32x64xf32, #tpu.memory_space<vmem>>, vector<32x64xf32>
    %1 = arith.truncf %0 : vector<32x64xf32> to vector<32x64xbf16>
    %c0_1 = arith.constant 0 : index
    %c0_2 = arith.constant 0 : index
    %2 = vector.load %arg2[%c0_1, %c0_2] : memref<68x32xbf16, #tpu.memory_space<vmem>>, vector<68x32xbf16>
    %cst = arith.constant dense<0.000000e+00> : vector<68x64xf32>
    %3 = tpu.matmul %2, %1, %cst {dimension_numbers = #tpu.dot_dimension_numbers<[1], [0], [0], [1], [0, 0, 1, 1], [], []>} : vector<68x32xbf16>, vector<32x64xbf16>, vector<68x64xf32> -> vector<68x64xf32>
    %4 = arith.truncf %3 : vector<68x64xf32> to vector<68x64xbf16>
    %c0_3 = arith.constant 0 : index
    %c0_4 = arith.constant 0 : index
    %5 = vector.load %arg3[%c0_3, %c0_4] : memref<64x768xbf16, #tpu.memory_space<vmem>>, vector<64x768xbf16>
    %cst_5 = arith.constant dense<0.000000e+00> : vector<68x768xf32>
    %6 = tpu.matmul %4, %5, %cst_5 {dimension_numbers = #tpu.dot_dimension_numbers<[1], [0], [0], [1], [0, 0, 1, 1], [], []>} : vector<68x64xbf16>, vector<64x768xbf16>, vector<68x768xf32> -> vector<68x768xf32>
    %c0_6 = arith.constant 0 : index
    %c0_7 = arith.constant 0 : index
    %7 = vector.load %arg4[%c0_6, %c0_7] : memref<1x256xf32, #tpu.memory_space<vmem>>, vector<1x256xf32>
    %8 = vector.extract_strided_slice %6 {offsets = [0, 0], sizes = [32, 256], strides = [1, 1]} : vector<68x768xf32> to vector<32x256xf32>
    %9 = vector.extract_strided_slice %6 {offsets = [1, 256], sizes = [32, 256], strides = [1, 1]} : vector<68x768xf32> to vector<32x256xf32>
    %10 = arith.addf %8, %9 : vector<32x256xf32>
    %11 = vector.extract_strided_slice %6 {offsets = [2, 512], sizes = [32, 256], strides = [1, 1]} : vector<68x768xf32> to vector<32x256xf32>
    %12 = arith.addf %10, %11 : vector<32x256xf32>
    %13 = vector.broadcast %7 : vector<1x256xf32> to vector<32x256xf32>
    %14 = arith.addf %12, %13 : vector<32x256xf32>
    %cst_8 = arith.constant 0.000000e+00 : f32
    %15 = vector.broadcast %cst_8 : f32 to vector<32x256xf32>
    %16 = arith.maximumf %14, %15 : vector<32x256xf32>
    %c0_9 = arith.constant 0 : index
    %c0_10 = arith.constant 0 : index
    %17 = vector.load %arg5[%c0_9, %c0_10] : memref<64x256xf32, #tpu.memory_space<vmem>>, vector<32x256xf32>
    tpu.vector_store %arg5[%c0_9, %c0_10], %16 {strides = array<i32>} : memref<64x256xf32, #tpu.memory_space<vmem>>, vector<32x256xf32>,
    %18 = vector.extract_strided_slice %6 {offsets = [34, 0], sizes = [32, 256], strides = [1, 1]} : vector<68x768xf32> to vector<32x256xf32>
    %19 = vector.extract_strided_slice %6 {offsets = [35, 256], sizes = [32, 256], strides = [1, 1]} : vector<68x768xf32> to vector<32x256xf32>
    %20 = arith.addf %18, %19 : vector<32x256xf32>
    %21 = vector.extract_strided_slice %6 {offsets = [36, 512], sizes = [32, 256], strides = [1, 1]} : vector<68x768xf32> to vector<32x256xf32>
    %22 = arith.addf %20, %21 : vector<32x256xf32>
    %23 = vector.broadcast %7 : vector<1x256xf32> to vector<32x256xf32>
    %24 = arith.addf %22, %23 : vector<32x256xf32>
    %cst_11 = arith.constant 0.000000e+00 : f32
    %25 = vector.broadcast %cst_11 : f32 to vector<32x256xf32>
    %26 = arith.maximumf %24, %25 : vector<32x256xf32>
    %c32 = arith.constant 32 : index
    %c0_12 = arith.constant 0 : index
    %27 = vector.load %arg5[%c32, %c0_12] : memref<64x256xf32, #tpu.memory_space<vmem>>, vector<32x256xf32>
    tpu.vector_store %arg5[%c32, %c0_12], %26 {strides = array<i32>} : memref<64x256xf32, #tpu.memory_space<vmem>>, vector<32x256xf32>,
    return
  }
  func.func @transform_0(%arg0: i32) -> (i32, i32) {
    %c0_i32 = arith.constant 0 : i32
    %c0_i32_0 = arith.constant 0 : i32
    %c0_i32_1 = arith.constant 0 : i32
    return %c0_i32, %c0_i32_0 : i32, i32
  }
  func.func @transform_1(%arg0: i32) -> (i32, i32) {
    %c0_i32 = arith.constant 0 : i32
    %c0_i32_0 = arith.constant 0 : i32
    %c0_i32_1 = arith.constant 0 : i32
    return %c0_i32, %c0_i32_0 : i32, i32
  }
  func.func @transform_2(%arg0: i32) -> (i32, i32) {
    %c0_i32 = arith.constant 0 : i32
    %c0_i32_0 = arith.constant 0 : i32
    %c0_i32_1 = arith.constant 0 : i32
    return %c0_i32, %c0_i32_0 : i32, i32
  }
  func.func @transform_3(%arg0: i32) -> (i32, i32) {
    %c0_i32 = arith.constant 0 : i32
    %c0_i32_0 = arith.constant 0 : i32
    %c0_i32_1 = arith.constant 0 : i32
    return %c0_i32, %c0_i32_0 : i32, i32
  }
  func.func @transform_4(%arg0: i32) -> (i32, i32) {
    %c0_i32 = arith.constant 0 : i32
    %c0_i32_0 = arith.constant 0 : i32
    %c0_i32_1 = arith.constant 0 : i32
    return %c0_i32, %c0_i32_0 : i32, i32
  }
}

</mosaic_0001>

<llo_original>
// kernel: forward.1
$region0: #{forward.1}
  #allocation0 [shape = 'u32[]', space=smem, size = 0x4, offset = 0x4, fixed_abs, tag = 'smem constant byte address 0x4 - core index']
  #allocation1 [shape = 'u32[72,128]{1,0:T(1,128)}', space=vmem, size = 0x9000, scoped, tag = 'internal scratch']
  %s0 = inlined_call_operand.vmem [shape: f32[32,64], index: 0, kind: input, shape index: {}]
  %s1 = inlined_call_operand.vmem [shape: bf16[68,32], index: 1, kind: input, shape index: {}]
  %s2 = inlined_call_operand.vmem [shape: bf16[64,768], index: 2, kind: input, shape index: {}]
  %s3 = inlined_call_operand.vmem [shape: f32[1,256], index: 3, kind: input, shape index: {}]
  %s4 = inlined_call_operand.vmem [shape: f32[64,256], index: 4, kind: output, shape index: {}]
  %s5 = sld [smem:[#allocation0]]
  $region26: #{forward.1} parent=0
    _
  %s7 = ssub.s32 1, %s5
  %s8 = scalar_select 0, %s7, %s5
  // Predicated region
  $region2: #{forward.1} parent=0 // pred_check
    _
  $region3: #{forward.1} parent=0 // pred_check_branch
    %10 = sbr.rel (0) target = $region5
  $region4: #{forward.1} parent=0 // pred_region
    _
  $region5: #{forward.1} parent=0 // pred_fallthru
    _
  // Predicated region
  $region6: #{forward.1} parent=0 // pred_check
    _
  $region7: #{forward.1} parent=0 // pred_check_branch
    %12 = sbr.rel (0) target = $region9
  $region8: #{forward.1} parent=0 // pred_region
    _
  $region9: #{forward.1} parent=0 // pred_fallthru
    _
  // Predicated region
  $region10: #{forward.1} parent=0 // pred_check
    _
  $region11: #{forward.1} parent=0 // pred_check_branch
    %14 = sbr.rel (0) target = $region13
  $region12: #{forward.1} parent=0 // pred_region
    _
  $region13: #{forward.1} parent=0 // pred_fallthru
    _
  // Predicated region
  $region14: #{forward.1} parent=0 // pred_check
    _
  $region15: #{forward.1} parent=0 // pred_check_branch
    %16 = sbr.rel (0) target = $region17
  $region16: #{forward.1} parent=0 // pred_region
    _
  $region17: #{forward.1} parent=0 // pred_fallthru
    _
  %v18 = vld [vmem:[%s0] sm:$0xff]
  %v19 = vld [vmem:[%s0 + $0x8] sm:$0xff]
  %v20 = vld [vmem:[%s0 + $0x10] sm:$0xff]
  %v21 = vld [vmem:[%s0 + $0x18] sm:$0xff]
  %v22 = vpack.c.bf16 %v19, %v18
  %v23 = vpack.c.bf16 %v21, %v20
  %v24 = vld [vmem:[%s1] sm:$0xf]
  %v25 = vld [vmem:[%s1 + $0x4] sm:$0xf]
  %v26 = vld [vmem:[%s1 + $0x8] sm:$0xf]
  %v27 = vld [vmem:[%s1 + $0xc] sm:$0xf]
  %v28 = vld [vmem:[%s1 + $0x10] sm:$0xf]
  %v29 = vld [vmem:[%s1 + $0x14] sm:$0xf]
  %v30 = vld [vmem:[%s1 + $0x18] sm:$0xf]
  %v31 = vld [vmem:[%s1 + $0x1c] sm:$0xf]
  %v32 = vld [vmem:[%s1 + $0x20] sm:$0x3]
  %v42 = vunpack.c.l.b16 %v24
  %v43 = vunpack.c.l.b16 %v25
  %v44 = vunpack.c.l.b16 %v26
  %v45 = vunpack.c.l.b16 %v27
  %v46 = vunpack.c.l.b16 %v28
  %v47 = vunpack.c.l.b16 %v29
  %v48 = vunpack.c.l.b16 %v30
  %v49 = vunpack.c.l.b16 %v31
  %v50 = vunpack.c.l.b16 %v32
  %v51 = vpack.c.b16 %v43, %v42
  %v52 = vpack.c.b16 %v45, %v44
  %v53 = vpack.c.b16 %v47, %v46
  %v54 = vpack.c.b16 %v49, %v48
  %v55 = vpack.c.b16 %v50, %v50
  %vm56 = vcmask 261120
  %v58 = vsel %vm56, %v51, 0
  %v61 = vsel %vm56, %v52, 0
  %v64 = vsel %vm56, %v53, 0
  %v67 = vsel %vm56, %v54, 0
  %v70 = vsel %vm56, %v55, 0
  %72 = vmatpush.bf16.msra.mxu0 0
  %73 = vmatpush.bf16.msra.mxu0 0
  %74 = vmatpush.bf16.msra.mxu0 0
  %75 = vmatpush.bf16.msra.mxu0 0
  %76 = vmatpush.bf16.msra.mxu0 0
  %77 = vmatpush.bf16.msra.mxu0 0
  %78 = vmatpush.bf16.msra.mxu0 %v23
  %79 = vmatpush.bf16.msra.mxu0 %v22
  %80 = vmatmul.bf16.gmra.mxu0 %v58
  %v81 = vpop.f32.mrf.mxu0
  %v82 = vadd.f32 0.0, %v81
  %v83 = vpop.f32.mrf.mxu0
  %v84 = vadd.f32 0.0, %v83
  %85 = vmatmul.bf16.gmra.mxu0 %v61
  %v86 = vpop.f32.mrf.mxu0
  %v87 = vadd.f32 0.0, %v86
  %v88 = vpop.f32.mrf.mxu0
  %v89 = vadd.f32 0.0, %v88
  %90 = vmatmul.bf16.gmra.mxu0 %v64
  %v91 = vpop.f32.mrf.mxu0
  %v92 = vadd.f32 0.0, %v91
  %v93 = vpop.f32.mrf.mxu0
  %v94 = vadd.f32 0.0, %v93
  %95 = vmatmul.bf16.gmra.mxu0 %v67
  %v96 = vpop.f32.mrf.mxu0
  %v97 = vadd.f32 0.0, %v96
  %v98 = vpop.f32.mrf.mxu0
  %v99 = vadd.f32 0.0, %v98
  %100 = vmatmul.bf16.gmra.mxu0 %v70
  %v101 = vpop.f32.mrf.mxu0
  %v102 = vadd.f32 0.0, %v101
  %v103 = vpop.f32.mrf.mxu0
  %104 = vdwg.mxu0
  %v105 = vpack.c.bf16 %v84, %v82
  %v106 = vpack.c.bf16 %v89, %v87
  %v107 = vpack.c.bf16 %v94, %v92
  %v108 = vpack.c.bf16 %v99, %v97
  %v109 = vpack.c.bf16 %v102, %v102
  %v110 = vld [vmem:[%s2] sm:$0xff]
  %v111 = vld [vmem:[%s2 + $0x8] sm:$0xff]
  %v112 = vld [vmem:[%s2 + $0x10] sm:$0xff]
  %v113 = vld [vmem:[%s2 + $0x18] sm:$0xff]
  %v114 = vld [vmem:[%s2 + $0x20] sm:$0xff]
  %v115 = vld [vmem:[%s2 + $0x28] sm:$0xff]
  %v116 = vld [vmem:[%s2 + $0x30] sm:$0xff]
  %v117 = vld [vmem:[%s2 + $0x38] sm:$0xff]
  %v118 = vld [vmem:[%s2 + $0x40] sm:$0xff]
  %v119 = vld [vmem:[%s2 + $0x48] sm:$0xff]
  %v120 = vld [vmem:[%s2 + $0x50] sm:$0xff]
  %v121 = vld [vmem:[%s2 + $0x58] sm:$0xff]
  %v122 = vld [vmem:[%s2 + $0x60] sm:$0xff]
  %v123 = vld [vmem:[%s2 + $0x68] sm:$0xff]
  %v124 = vld [vmem:[%s2 + $0x70] sm:$0xff]
  %v125 = vld [vmem:[%s2 + $0x78] sm:$0xff]
  %v126 = vld [vmem:[%s2 + $0x80] sm:$0xff]
  %v127 = vld [vmem:[%s2 + $0x88] sm:$0xff]
  %v128 = vld [vmem:[%s2 + $0x90] sm:$0xff]
  %v129 = vld [vmem:[%s2 + $0x98] sm:$0xff]
  %v130 = vld [vmem:[%s2 + $0xa0] sm:$0xff]
  %v131 = vld [vmem:[%s2 + $0xa8] sm:$0xff]
  %v132 = vld [vmem:[%s2 + $0xb0] sm:$0xff]
  %v133 = vld [vmem:[%s2 + $0xb8] sm:$0xff]
  %v158 = vunpack.c.l.b16 %v110
  %v159 = vunpack.c.h.b16 %v110
  %v160 = vunpack.c.l.b16 %v111
  %v161 = vunpack.c.h.b16 %v111
  %v162 = vunpack.c.l.b16 %v112
  %v163 = vunpack.c.h.b16 %v112
  %v164 = vunpack.c.l.b16 %v113
  %v165 = vunpack.c.h.b16 %v113
  %v166 = vunpack.c.l.b16 %v114
  %v167 = vunpack.c.h.b16 %v114
  %v168 = vunpack.c.l.b16 %v115
  %v169 = vunpack.c.h.b16 %v115
  %v170 = vunpack.c.l.b16 %v116
  %v171 = vunpack.c.h.b16 %v116
  %v172 = vunpack.c.l.b16 %v117
  %v173 = vunpack.c.h.b16 %v117
  %v174 = vunpack.c.l.b16 %v118
  %v175 = vunpack.c.h.b16 %v118
  %v176 = vunpack.c.l.b16 %v119
  %v177 = vunpack.c.h.b16 %v119
  %v178 = vunpack.c.l.b16 %v120
  %v179 = vunpack.c.h.b16 %v120
  %v180 = vunpack.c.l.b16 %v121
  %v181 = vunpack.c.h.b16 %v121
  %v182 = vunpack.c.l.b16 %v122
  %v183 = vunpack.c.h.b16 %v122
  %v184 = vunpack.c.l.b16 %v123
  %v185 = vunpack.c.h.b16 %v123
  %v186 = vunpack.c.l.b16 %v124
  %v187 = vunpack.c.h.b16 %v124
  %v188 = vunpack.c.l.b16 %v125
  %v189 = vunpack.c.h.b16 %v125
  %v190 = vunpack.c.l.b16 %v126
  %v191 = vunpack.c.h.b16 %v126
  %v192 = vunpack.c.l.b16 %v127
  %v193 = vunpack.c.h.b16 %v127
  %v194 = vunpack.c.l.b16 %v128
  %v195 = vunpack.c.h.b16 %v128
  %v196 = vunpack.c.l.b16 %v129
  %v197 = vunpack.c.h.b16 %v129
  %v198 = vunpack.c.l.b16 %v130
  %v199 = vunpack.c.h.b16 %v130
  %v200 = vunpack.c.l.b16 %v131
  %v201 = vunpack.c.h.b16 %v131
  %v202 = vunpack.c.l.b16 %v132
  %v203 = vunpack.c.h.b16 %v132
  %v204 = vunpack.c.l.b16 %v133
  %v205 = vunpack.c.h.b16 %v133
  %v206 = vpack.c.b16 %v164, %v158
  %v207 = vpack.c.b16 %v165, %v159
  %v208 = vpack.c.b16 %v166, %v160
  %v209 = vpack.c.b16 %v167, %v161
  %v210 = vpack.c.b16 %v168, %v162
  %v211 = vpack.c.b16 %v169, %v163
  %v212 = vpack.c.b16 %v176, %v170
  %v213 = vpack.c.b16 %v177, %v171
  %v214 = vpack.c.b16 %v178, %v172
  %v215 = vpack.c.b16 %v179, %v173
  %v216 = vpack.c.b16 %v180, %v174
  %v217 = vpack.c.b16 %v181, %v175
  %v218 = vpack.c.b16 %v188, %v182
  %v219 = vpack.c.b16 %v189, %v183
  %v220 = vpack.c.b16 %v190, %v184
  %v221 = vpack.c.b16 %v191, %v185
  %v222 = vpack.c.b16 %v192, %v186
  %v223 = vpack.c.b16 %v193, %v187
  %v224 = vpack.c.b16 %v200, %v194
  %v225 = vpack.c.b16 %v201, %v195
  %v226 = vpack.c.b16 %v202, %v196
  %v227 = vpack.c.b16 %v203, %v197
  %v228 = vpack.c.b16 %v204, %v198
  %v229 = vpack.c.b16 %v205, %v199
  %vm254 = vcmask 523264
  %v256 = vsel %vm254, %v105, 0
  %v259 = vsel %vm254, %v106, 0
  %v262 = vsel %vm254, %v107, 0
  %v265 = vsel %vm254, %v108, 0
  %v268 = vsel %vm254, %v109, 0
  %270 = vmatpush.bf16.msra.mxu0 0
  %271 = vmatpush.bf16.msra.mxu0 0
  %272 = vmatpush.bf16.msra.mxu0 0
  %273 = vmatpush.bf16.msra.mxu0 0
  %274 = vmatpush.bf16.msra.mxu0 %v224
  %275 = vmatpush.bf16.msra.mxu0 %v218
  %276 = vmatpush.bf16.msra.mxu0 %v212
  %277 = vmatpush.bf16.msra.mxu0 %v206
  %278 = vmatmul.bf16.gmra.mxu0 %v256
  %v279 = vpop.f32.mrf.mxu0
  %v280 = vadd.f32 0.0, %v279
  %v281 = vpop.f32.mrf.mxu0
  %v282 = vadd.f32 0.0, %v281
  %283 = vmatmul.bf16.gmra.mxu0 %v259
  %v284 = vpop.f32.mrf.mxu0
  %v285 = vadd.f32 0.0, %v284
  %v286 = vpop.f32.mrf.mxu0
  %v287 = vadd.f32 0.0, %v286
  %288 = vmatmul.bf16.gmra.mxu0 %v262
  %v289 = vpop.f32.mrf.mxu0
  %v290 = vadd.f32 0.0, %v289
  %v291 = vpop.f32.mrf.mxu0
  %v292 = vadd.f32 0.0, %v291
  %293 = vmatmul.bf16.gmra.mxu0 %v265
  %v294 = vpop.f32.mrf.mxu0
  %v295 = vadd.f32 0.0, %v294
  %v296 = vpop.f32.mrf.mxu0
  %v297 = vadd.f32 0.0, %v296
  %298 = vmatmul.bf16.gmra.mxu0 %v268
  %v299 = vpop.f32.mrf.mxu0
  %v300 = vadd.f32 0.0, %v299
  %v301 = vpop.f32.mrf.mxu0
  %302 = vdwg.mxu0
  %303 = vmatpush.bf16.msra.mxu0 0
  %304 = vmatpush.bf16.msra.mxu0 0
  %305 = vmatpush.bf16.msra.mxu0 0
  %306 = vmatpush.bf16.msra.mxu0 0
  %307 = vmatpush.bf16.msra.mxu0 %v225
  %308 = vmatpush.bf16.msra.mxu0 %v219
  %309 = vmatpush.bf16.msra.mxu0 %v213
  %310 = vmatpush.bf16.msra.mxu0 %v207
  %311 = vmatmul.bf16.gmra.mxu0 %v256
  %v312 = vpop.f32.mrf.mxu0
  %v313 = vadd.f32 0.0, %v312
  %v314 = vpop.f32.mrf.mxu0
  %v315 = vadd.f32 0.0, %v314
  %316 = vmatmul.bf16.gmra.mxu0 %v259
  %v317 = vpop.f32.mrf.mxu0
  %v318 = vadd.f32 0.0, %v317
  %v319 = vpop.f32.mrf.mxu0
  %v320 = vadd.f32 0.0, %v319
  %321 = vmatmul.bf16.gmra.mxu0 %v262
  %v322 = vpop.f32.mrf.mxu0
  %v323 = vadd.f32 0.0, %v322
  %v324 = vpop.f32.mrf.mxu0
  %v325 = vadd.f32 0.0, %v324
  %326 = vmatmul.bf16.gmra.mxu0 %v265
  %v327 = vpop.f32.mrf.mxu0
  %v328 = vadd.f32 0.0, %v327
  %v329 = vpop.f32.mrf.mxu0
  %v330 = vadd.f32 0.0, %v329
  %331 = vmatmul.bf16.gmra.mxu0 %v268
  %v332 = vpop.f32.mrf.mxu0
  %v333 = vadd.f32 0.0, %v332
  %v334 = vpop.f32.mrf.mxu0
  %335 = vdwg.mxu0
  %336 = vmatpush.bf16.msra.mxu0 0
  %337 = vmatpush.bf16.msra.mxu0 0
  %338 = vmatpush.bf16.msra.mxu0 0
  %339 = vmatpush.bf16.msra.mxu0 0
  %340 = vmatpush.bf16.msra.mxu0 %v226
  %341 = vmatpush.bf16.msra.mxu0 %v220
  %342 = vmatpush.bf16.msra.mxu0 %v214
  %343 = vmatpush.bf16.msra.mxu0 %v208
  %344 = vmatmul.bf16.gmra.mxu0 %v256
  %v345 = vpop.f32.mrf.mxu0
  %v346 = vadd.f32 0.0, %v345
  %v347 = vpop.f32.mrf.mxu0
  %v348 = vadd.f32 0.0, %v347
  %349 = vmatmul.bf16.gmra.mxu0 %v259
  %v350 = vpop.f32.mrf.mxu0
  %v351 = vadd.f32 0.0, %v350
  %v352 = vpop.f32.mrf.mxu0
  %v353 = vadd.f32 0.0, %v352
  %354 = vmatmul.bf16.gmra.mxu0 %v262
  %v355 = vpop.f32.mrf.mxu0
  %v356 = vadd.f32 0.0, %v355
  %v357 = vpop.f32.mrf.mxu0
  %v358 = vadd.f32 0.0, %v357
  %359 = vmatmul.bf16.gmra.mxu0 %v265
  %v360 = vpop.f32.mrf.mxu0
  %v361 = vadd.f32 0.0, %v360
  %v362 = vpop.f32.mrf.mxu0
  %v363 = vadd.f32 0.0, %v362
  %364 = vmatmul.bf16.gmra.mxu0 %v268
  %v365 = vpop.f32.mrf.mxu0
  %v366 = vadd.f32 0.0, %v365
  %v367 = vpop.f32.mrf.mxu0
  %368 = vdwg.mxu0
  %369 = vmatpush.bf16.msra.mxu0 0
  %370 = vmatpush.bf16.msra.mxu0 0
  %371 = vmatpush.bf16.msra.mxu0 0
  %372 = vmatpush.bf16.msra.mxu0 0
  %373 = vmatpush.bf16.msra.mxu0 %v227
  %374 = vmatpush.bf16.msra.mxu0 %v221
  %375 = vmatpush.bf16.msra.mxu0 %v215
  %376 = vmatpush.bf16.msra.mxu0 %v209
  %377 = vmatmul.bf16.gmra.mxu0 %v256
  %v378 = vpop.f32.mrf.mxu0
  %v379 = vadd.f32 0.0, %v378
  %v380 = vpop.f32.mrf.mxu0
  %v381 = vadd.f32 0.0, %v380
  %382 = vmatmul.bf16.gmra.mxu0 %v259
  %v383 = vpop.f32.mrf.mxu0
  %v384 = vadd.f32 0.0, %v383
  %v385 = vpop.f32.mrf.mxu0
  %v386 = vadd.f32 0.0, %v385
  %387 = vmatmul.bf16.gmra.mxu0 %v262
  %v388 = vpop.f32.mrf.mxu0
  %v389 = vadd.f32 0.0, %v388
  %v390 = vpop.f32.mrf.mxu0
  %v391 = vadd.f32 0.0, %v390
  %392 = vmatmul.bf16.gmra.mxu0 %v265
  %v393 = vpop.f32.mrf.mxu0
  %v394 = vadd.f32 0.0, %v393
  %v395 = vpop.f32.mrf.mxu0
  %v396 = vadd.f32 0.0, %v395
  %397 = vmatmul.bf16.gmra.mxu0 %v268
  %v398 = vpop.f32.mrf.mxu0
  %v399 = vadd.f32 0.0, %v398
  %v400 = vpop.f32.mrf.mxu0
  %401 = vdwg.mxu0
  %402 = vmatpush.bf16.msra.mxu0 0
  %403 = vmatpush.bf16.msra.mxu0 0
  %404 = vmatpush.bf16.msra.mxu0 0
  %405 = vmatpush.bf16.msra.mxu0 0
  %406 = vmatpush.bf16.msra.mxu0 %v228
  %407 = vmatpush.bf16.msra.mxu0 %v222
  %408 = vmatpush.bf16.msra.mxu0 %v216
  %409 = vmatpush.bf16.msra.mxu0 %v210
  %410 = vmatmul.bf16.gmra.mxu0 %v256
  %v411 = vpop.f32.mrf.mxu0
  %v412 = vadd.f32 0.0, %v411
  %v413 = vpop.f32.mrf.mxu0
  %v414 = vadd.f32 0.0, %v413
  %415 = vmatmul.bf16.gmra.mxu0 %v259
  %v416 = vpop.f32.mrf.mxu0
  %v417 = vadd.f32 0.0, %v416
  %v418 = vpop.f32.mrf.mxu0
  %v419 = vadd.f32 0.0, %v418
  %420 = vmatmul.bf16.gmra.mxu0 %v262
  %v421 = vpop.f32.mrf.mxu0
  %v422 = vadd.f32 0.0, %v421
  %v423 = vpop.f32.mrf.mxu0
  %v424 = vadd.f32 0.0, %v423
  %425 = vmatmul.bf16.gmra.mxu0 %v265
  %v426 = vpop.f32.mrf.mxu0
  %v427 = vadd.f32 0.0, %v426
  %v428 = vpop.f32.mrf.mxu0
  %v429 = vadd.f32 0.0, %v428
  %430 = vmatmul.bf16.gmra.mxu0 %v268
  %v431 = vpop.f32.mrf.mxu0
  %v432 = vadd.f32 0.0, %v431
  %v433 = vpop.f32.mrf.mxu0
  %434 = vdwg.mxu0
  %435 = vmatpush.bf16.msra.mxu0 0
  %436 = vmatpush.bf16.msra.mxu0 0
  %437 = vmatpush.bf16.msra.mxu0 0
  %438 = vmatpush.bf16.msra.mxu0 0
  %439 = vmatpush.bf16.msra.mxu0 %v229
  %440 = vmatpush.bf16.msra.mxu0 %v223
  %441 = vmatpush.bf16.msra.mxu0 %v217
  %442 = vmatpush.bf16.msra.mxu0 %v211
  %443 = vmatmul.bf16.gmra.mxu0 %v256
  %v444 = vpop.f32.mrf.mxu0
  %v445 = vadd.f32 0.0, %v444
  %v446 = vpop.f32.mrf.mxu0
  %v447 = vadd.f32 0.0, %v446
  %448 = vmatmul.bf16.gmra.mxu0 %v259
  %v449 = vpop.f32.mrf.mxu0
  %v450 = vadd.f32 0.0, %v449
  %v451 = vpop.f32.mrf.mxu0
  %v452 = vadd.f32 0.0, %v451
  %453 = vmatmul.bf16.gmra.mxu0 %v262
  %v454 = vpop.f32.mrf.mxu0
  %v455 = vadd.f32 0.0, %v454
  %v456 = vpop.f32.mrf.mxu0
  %v457 = vadd.f32 0.0, %v456
  %458 = vmatmul.bf16.gmra.mxu0 %v265
  %v459 = vpop.f32.mrf.mxu0
  %v460 = vadd.f32 0.0, %v459
  %v461 = vpop.f32.mrf.mxu0
  %v462 = vadd.f32 0.0, %v461
  %463 = vmatmul.bf16.gmra.mxu0 %v268
  %v464 = vpop.f32.mrf.mxu0
  %v465 = vadd.f32 0.0, %v464
  %v466 = vpop.f32.mrf.mxu0
  %467 = vdwg.mxu0
  %v468 = vld [vmem:[%s3] sm:$0x3]
  %vm479 = vcmask 1046528
  %v480 = vrot.slane %v346, 1
  %v481 = vrot.slane %v348, 1
  %v482 = vsel %vm479, %v480, %v481
  %v483 = vrot.slane %v379, 1
  %v484 = vrot.slane %v381, 1
  %v485 = vsel %vm479, %v483, %v484
  %v486 = vrot.slane %v351, 1
  %v487 = vsel %vm479, %v481, %v486
  %v488 = vrot.slane %v384, 1
  %v489 = vsel %vm479, %v484, %v488
  %v490 = vrot.slane %v353, 1
  %v491 = vsel %vm479, %v486, %v490
  %v492 = vrot.slane %v386, 1
  %v493 = vsel %vm479, %v488, %v492
  %v494 = vrot.slane %v356, 1
  %v495 = vsel %vm479, %v490, %v494
  %v496 = vrot.slane %v389, 1
  %v497 = vsel %vm479, %v492, %v496
  %v506 = vadd.f32 %v280, %v482
  %v507 = vadd.f32 %v313, %v485
  %v508 = vadd.f32 %v282, %v487
  %v509 = vadd.f32 %v315, %v489
  %v510 = vadd.f32 %v285, %v491
  %v511 = vadd.f32 %v318, %v493
  %v512 = vadd.f32 %v287, %v495
  %v513 = vadd.f32 %v320, %v497
  %vm524 = vcmask 1045504
  %v525 = vrot.slane %v412, 2
  %v526 = vrot.slane %v414, 2
  %v527 = vsel %vm524, %v525, %v526
  %v528 = vrot.slane %v445, 2
  %v529 = vrot.slane %v447, 2
  %v530 = vsel %vm524, %v528, %v529
  %v531 = vrot.slane %v417, 2
  %v532 = vsel %vm524, %v526, %v531
  %v533 = vrot.slane %v450, 2
  %v534 = vsel %vm524, %v529, %v533
  %v535 = vrot.slane %v419, 2
  %v536 = vsel %vm524, %v531, %v535
  %v537 = vrot.slane %v452, 2
  %v538 = vsel %vm524, %v533, %v537
  %v539 = vrot.slane %v422, 2
  %v540 = vsel %vm524, %v535, %v539
  %v541 = vrot.slane %v455, 2
  %v542 = vsel %vm524, %v537, %v541
  %v551 = vadd.f32 %v506, %v527
  %v552 = vadd.f32 %v507, %v530
  %v553 = vadd.f32 %v508, %v532
  %v554 = vadd.f32 %v509, %v534
  %v555 = vadd.f32 %v510, %v536
  %v556 = vadd.f32 %v511, %v538
  %v557 = vadd.f32 %v512, %v540
  %v558 = vadd.f32 %v513, %v542
  %v560 = vperm.slane %v468, 0
  %v561 = vperm.slane %v468, 1
  %v564 = vadd.f32 %v551, %v560
  %v565 = vadd.f32 %v552, %v561
  %v566 = vadd.f32 %v553, %v560
  %v567 = vadd.f32 %v554, %v561
  %v568 = vadd.f32 %v555, %v560
  %v569 = vadd.f32 %v556, %v561
  %v570 = vadd.f32 %v557, %v560
  %v571 = vadd.f32 %v558, %v561
  %v572 = vmax.f32 %v564, 0.0
  %v573 = vmax.f32 %v565, 0.0
  %v574 = vmax.f32 %v566, 0.0
  %v575 = vmax.f32 %v567, 0.0
  %v576 = vmax.f32 %v568, 0.0
  %v577 = vmax.f32 %v569, 0.0
  %v578 = vmax.f32 %v570, 0.0
  %v579 = vmax.f32 %v571, 0.0
  %580 = vst [vmem:[%s4] sm:$0xff] %v572
  %581 = vst [vmem:[%s4 + $0x8] sm:$0xff] %v573
  %582 = vst [vmem:[%s4 + $0x10] sm:$0xff] %v574
  %583 = vst [vmem:[%s4 + $0x18] sm:$0xff] %v575
  %584 = vst [vmem:[%s4 + $0x20] sm:$0xff] %v576
  %585 = vst [vmem:[%s4 + $0x28] sm:$0xff] %v577
  %586 = vst [vmem:[%s4 + $0x30] sm:$0xff] %v578
  %587 = vst [vmem:[%s4 + $0x38] sm:$0xff] %v579
  %v596 = vrot.slane %v358, 1
  %v597 = vsel %vm479, %v494, %v596
  %v598 = vrot.slane %v391, 1
  %v599 = vsel %vm479, %v496, %v598
  %v600 = vrot.slane %v361, 1
  %v601 = vsel %vm479, %v596, %v600
  %v602 = vrot.slane %v394, 1
  %v603 = vsel %vm479, %v598, %v602
  %v604 = vrot.slane %v363, 1
  %v605 = vsel %vm479, %v600, %v604
  %v606 = vrot.slane %v396, 1
  %v607 = vsel %vm479, %v602, %v606
  %v608 = vrot.slane %v366, 1
  %v609 = vsel %vm479, %v604, %v608
  %v610 = vrot.slane %v399, 1
  %v611 = vsel %vm479, %v606, %v610
  %v622 = vadd.f32 %v290, %v597
  %v623 = vadd.f32 %v323, %v599
  %v624 = vadd.f32 %v292, %v601
  %v625 = vadd.f32 %v325, %v603
  %v626 = vadd.f32 %v295, %v605
  %v627 = vadd.f32 %v328, %v607
  %v628 = vadd.f32 %v297, %v609
  %v629 = vadd.f32 %v330, %v611
  %v630 = vadd.f32 %v300, %v608
  %v631 = vadd.f32 %v333, %v610
  %v640 = vrot.slane %v424, 2
  %v641 = vsel %vm524, %v539, %v640
  %v642 = vrot.slane %v457, 2
  %v643 = vsel %vm524, %v541, %v642
  %v644 = vrot.slane %v427, 2
  %v645 = vsel %vm524, %v640, %v644
  %v646 = vrot.slane %v460, 2
  %v647 = vsel %vm524, %v642, %v646
  %v648 = vrot.slane %v429, 2
  %v649 = vsel %vm524, %v644, %v648
  %v650 = vrot.slane %v462, 2
  %v651 = vsel %vm524, %v646, %v650
  %v652 = vrot.slane %v432, 2
  %v653 = vsel %vm524, %v648, %v652
  %v654 = vrot.slane %v465, 2
  %v655 = vsel %vm524, %v650, %v654
  %v666 = vadd.f32 %v622, %v641
  %v667 = vadd.f32 %v623, %v643
  %v668 = vadd.f32 %v624, %v645
  %v669 = vadd.f32 %v625, %v647
  %v670 = vadd.f32 %v626, %v649
  %v671 = vadd.f32 %v627, %v651
  %v672 = vadd.f32 %v628, %v653
  %v673 = vadd.f32 %v629, %v655
  %v674 = vadd.f32 %v630, %v652
  %v675 = vadd.f32 %v631, %v654
  %v676 = vadd.f32 %v666, %v560
  %v677 = vadd.f32 %v667, %v561
  %v678 = vadd.f32 %v668, %v560
  %v679 = vadd.f32 %v669, %v561
  %v680 = vadd.f32 %v670, %v560
  %v681 = vadd.f32 %v671, %v561
  %v682 = vadd.f32 %v672, %v560
  %v683 = vadd.f32 %v673, %v561
  %v684 = vadd.f32 %v674, %v560
  %v685 = vadd.f32 %v675, %v561
  %v686 = vmax.f32 %v676, 0.0
  %v687 = vmax.f32 %v677, 0.0
  %v688 = vmax.f32 %v678, 0.0
  %v689 = vmax.f32 %v679, 0.0
  %v690 = vmax.f32 %v680, 0.0
  %v691 = vmax.f32 %v681, 0.0
  %v692 = vmax.f32 %v682, 0.0
  %v693 = vmax.f32 %v683, 0.0
  %v694 = vmax.f32 %v684, 0.0
  %v695 = vmax.f32 %v685, 0.0
  %v706 = vrot.slane %v686, 2
  %v707 = vrot.slane %v688, 2
  %v708 = vsel %vm524, %v706, %v707
  %v709 = vrot.slane %v687, 2
  %v710 = vrot.slane %v689, 2
  %v711 = vsel %vm524, %v709, %v710
  %v712 = vrot.slane %v690, 2
  %v713 = vsel %vm524, %v707, %v712
  %v714 = vrot.slane %v691, 2
  %v715 = vsel %vm524, %v710, %v714
  %v716 = vrot.slane %v692, 2
  %v717 = vsel %vm524, %v712, %v716
  %v718 = vrot.slane %v693, 2
  %v719 = vsel %vm524, %v714, %v718
  %v720 = vrot.slane %v694, 2
  %v721 = vsel %vm524, %v716, %v720
  %v722 = vrot.slane %v695, 2
  %v723 = vsel %vm524, %v718, %v722
  %732 = vst [vmem:[%s4 + $0x40] sm:$0xff] %v708
  %733 = vst [vmem:[%s4 + $0x48] sm:$0xff] %v711
  %734 = vst [vmem:[%s4 + $0x50] sm:$0xff] %v713
  %735 = vst [vmem:[%s4 + $0x58] sm:$0xff] %v715
  %736 = vst [vmem:[%s4 + $0x60] sm:$0xff] %v717
  %737 = vst [vmem:[%s4 + $0x68] sm:$0xff] %v719
  %738 = vst [vmem:[%s4 + $0x70] sm:$0xff] %v721
  %739 = vst [vmem:[%s4 + $0x78] sm:$0xff] %v723
  // Predicated region
  $region18: #{forward.1} parent=0 // pred_check
    _
  $region19: #{forward.1} parent=0 // pred_check_branch
    %741 = sbr.rel (0) target = $region21
  $region20: #{forward.1} parent=0 // pred_region
    _
  $region21: #{forward.1} parent=0 // pred_fallthru
    _
  // Predicated region
  $region22: #{forward.1} parent=0 // pred_check
    _
  $region23: #{forward.1} parent=0 // pred_check_branch
    %743 = sbr.rel (0) target = $region25
  $region24: #{forward.1} parent=0 // pred_region
    _
  $region25: #{forward.1} parent=0 // pred_fallthru
    _

</llo_original>
